<compile_context>
chip_gen: v7x
topology: tpu7x:2x2x1
jax: 0.10.0
libtpu: 0.0.40
codegen_flags: <defaults>
</compile_context>

<pallas_src>
import functools
import math

import jax
import jax.numpy as jnp
from jax import lax
from jax.experimental import pallas as pl
from jax.experimental.pallas import tpu as pltpu

_LANES = 128
_CHUNK_ROWS = 512                            # 512*128*4B = 256 KiB f32 sub-chunk
_TARGET_STEP_INPUT_BYTES = 8 * 1024 * 1024   # both inputs, one pipeline buffer
_LN2 = math.log(2.0)


def _round_up(a: int, b: int) -> int:
    return -(-a // b) * b


def _cdiv(a: int, b: int) -> int:
    return -(-a // b)


def _sublane_multiple(dtype) -> int:
    itemsize = jnp.dtype(dtype).itemsize
    return max(8, 32 // itemsize)  # 8 for 4-byte, 16 for 2-byte, 32 for 1-byte


def _bce_tile_partial(pred_ref, tgt_ref, *, chunk_rows, num_chunks, row_limit):
    """(8,128) partial sum of BCE-with-logits loss over this tile, streamed.

    row_limit: None -> every row of the tile is valid (no mask cost).
               int  -> rows with tile-local index >= row_limit are zeroed
                       (partial last block; garbage rows masked out).
    """
    if row_limit is not None:
        base_rows = lax.broadcasted_iota(jnp.int32, (chunk_rows, _LANES), 0)

    def chunk_partial(c):
        start = pl.multiple_of(c * chunk_rows, chunk_rows)
        x = pred_ref[pl.ds(start, chunk_rows), :].astype(jnp.float32)
        y = tgt_ref[pl.ds(start, chunk_rows), :].astype(jnp.float32)
        # Numerically stable BCE-with-logits (matches torch.nn.BCEWithLogitsLoss).
        loss = jnp.maximum(x, 0.0) - x * y + jnp.log1p(jnp.exp(-jnp.abs(x)))
        if row_limit is not None:
            loss = jnp.where(base_rows < (row_limit - c * chunk_rows), loss, 0.0)
        # (chunk_rows,128) -> (chunk_rows//8, 8, 128) is a layout-trivial regroup
        # into native (8,128) vreg tiles; the sum is pure VPU adds (no XLU).
        return loss.reshape(chunk_rows // 8, 8, _LANES).sum(axis=0)

    acc = chunk_partial(0)
    if num_chunks > 1:
        acc = lax.fori_loop(
            1, num_chunks, lambda c, a: a + chunk_partial(c), acc,
            unroll=min(num_chunks - 1, 8),
        )
    return acc


def _bce_kernel(pred_ref, tgt_ref, out_ref, *, tile_rows, chunk_rows,
                num_tiles, last_rows, last_partial):
    num_chunks = tile_rows // chunk_rows
    partial = functools.partial(
        _bce_tile_partial, pred_ref, tgt_ref,
        chunk_rows=chunk_rows, num_chunks=num_chunks,
    )

    if not last_partial:
        # Every tile is fully valid: zero masking cost anywhere.
        out_ref[...] = partial(row_limit=None)
    elif num_tiles == 1:
        out_ref[...] = partial(row_limit=last_rows)
    else:
        i = pl.program_id(0)

        @pl.when(i < num_tiles - 1)
        def _():
            out_ref[...] = partial(row_limit=None)

        @pl.when(i == num_tiles - 1)
        def _():
            out_ref[...] = partial(row_limit=last_rows)


def vanilla_bce_loss(predictions, targets, lengths=None):
    """BCEWithLogitsLoss with 'mean' reduction; `lengths` ignored (as in ref)."""
    assert predictions.shape == targets.shape
    n = int(predictions.size)
    assert n > 0

    x = predictions.reshape(-1)
    y = targets.reshape(-1)

    # Only pad the <128-element lane tail (zeros contribute exactly ln2 each,
    # corrected in the epilogue).  No full-array row padding is ever done.
    n_lane = _round_up(n, _LANES)
    lane_pad = n_lane - n
    if lane_pad:
        x = jnp.pad(x, (0, lane_pad))
        y = jnp.pad(y, (0, lane_pad))
    rows = n_lane // _LANES
    x2 = x.reshape(rows, _LANES)
    y2 = y.reshape(rows, _LANES)

    # Dtype-aware tile sizing: ~8 MiB of inputs per grid step, sublane multiple
    # derived from dtype packing (8 for 4B, 16 for 2B, 32 for 1B).
    m = max(_sublane_multiple(x2.dtype), _sublane_multiple(y2.dtype))
    bytes_per_row = _LANES * (jnp.dtype(x2.dtype).itemsize +
                              jnp.dtype(y2.dtype).itemsize)
    max_tile_rows = max(
        _CHUNK_ROWS,
        (_TARGET_STEP_INPUT_BYTES // bytes_per_row) // _CHUNK_ROWS * _CHUNK_ROWS,
    )

    if rows <= 2 * m:
        tile_rows = _round_up(rows, m)           # single (possibly partial) block
    else:
        # >= 2 tiles whenever rows permit -> both TensorCores busy on v7x.
        want_tiles = max(2, _cdiv(rows, max_tile_rows))
        tile_rows = _cdiv(rows, want_tiles)
        granule = _CHUNK_ROWS if tile_rows >= _CHUNK_ROWS else m
        tile_rows = min(_round_up(tile_rows, granule), max_tile_rows)
    num_tiles = _cdiv(rows, tile_rows)
    chunk_rows = min(_CHUNK_ROWS, tile_rows)
    last_rows = rows - (num_tiles - 1) * tile_rows
    last_partial = last_rows != tile_rows

    kernel = functools.partial(
        _bce_kernel, tile_rows=tile_rows, chunk_rows=chunk_rows,
        num_tiles=num_tiles, last_rows=last_rows, last_partial=last_partial,
    )

    cost = pl.CostEstimate(
        flops=7 * n_lane,
        transcendentals=2 * n_lane,
        bytes_accessed=rows * bytes_per_row + num_tiles * 8 * _LANES * 4,
    )

    partials = pl.pallas_call(
        kernel,
        out_shape=jax.ShapeDtypeStruct((num_tiles, 8, _LANES), jnp.float32),
        grid_spec=pltpu.PrefetchScalarGridSpec(
            num_scalar_prefetch=0,
            grid=(num_tiles,),
            in_specs=[
                pl.BlockSpec((tile_rows, _LANES), lambda i: (i, 0)),
                pl.BlockSpec((tile_rows, _LANES), lambda i: (i, 0)),
            ],
            out_specs=pl.BlockSpec((pl.Squeezed(), 8, _LANES),
                                   lambda i: (i, 0, 0)),
        ),
        compiler_params=pltpu.CompilerParams(
            dimension_semantics=("parallel",),    # each step owns its output block
            vmem_limit_bytes=32 * 1024 * 1024,
        ),
        cost_estimate=cost,
    )(x2, y2)

    # Tiny epilogue reduction outside the kernel (XLA): subtract the ln2
    # contribution of the lane-tail zero padding, then take the mean over n.
    total = jnp.sum(partials, dtype=jnp.float32)
    if lane_pad:
        total = total - jnp.float32(lane_pad * _LN2)
    return total / jnp.float32(n)


def _reference(predictions, targets):
    x = predictions.astype(jnp.float32)
    y = targets.astype(jnp.float32)
    loss = jnp.maximum(x, 0.0) - x * y + jnp.log1p(jnp.exp(-jnp.abs(x)))
    return jnp.mean(loss)


if __name__ == "__main__":
    key = jax.random.PRNGKey(0)

    # Primary small test matching the module's typical (batch, seq) usage.
    k1, k2 = jax.random.split(key)
    B, S = 16, 128
    predictions = jax.random.normal(k1, (B, S), dtype=jnp.float32) * 3.0
    targets = jax.random.bernoulli(k2, 0.5, (B, S)).astype(jnp.float32)

    loss = vanilla_bce_loss(predictions, targets)
    jax.block_until_ready(loss)
    ref = _reference(predictions, targets)
    assert jnp.allclose(loss, ref, rtol=1e-5, atol=1e-5), (loss, ref)

    # Ragged shape -> lane-tail padding + partial-last-block masking path.
    k3, k4 = jax.random.split(k1)
    p2 = jax.random.normal(k3, (37, 129), dtype=jnp.float32) * 2.0
    t2 = jax.random.bernoulli(k4, 0.3, (37, 129)).astype(jnp.float32)
    l2 = vanilla_bce_loss(p2, t2)
    jax.block_until_ready(l2)
    assert jnp.allclose(l2, _reference(p2, t2), rtol=1e-5, atol=1e-5), (l2,)

    # Multi-tile shape -> parallel multi-block path with streamed chunks.
    k5, k6 = jax.random.split(k3)
    p3 = jax.random.normal(k5, (1200, 512), dtype=jnp.float32)
    t3 = jax.random.bernoulli(k6, 0.5, (1200, 512)).astype(jnp.float32)
    l3 = vanilla_bce_loss(p3, t3)
    jax.block_until_ready(l3)
    assert jnp.allclose(l3, _reference(p3, t3), rtol=1e-5, atol=1e-5), (l3,)

    print("KERNEL_OK")
</pallas_src>

<mosaic_0001>
module attributes {stable_mosaic.version = 11 : i64} {
  func.func @_bce_kernel(%arg0: i32, %arg1: memref<16x128xf32, #tpu.memory_space<vmem>>, %arg2: memref<16x128xf32, #tpu.memory_space<vmem>>, %arg3: memref<1x8x128xf32, #tpu.memory_space<vmem>>) attributes {dimension_semantics = [#tpu.dimension_semantics<parallel>], iteration_bounds = array<i64: 1>, scalar_prefetch = 0 : i64, scratch_operands = 0 : i64, tpu.core_type = #tpu.core_type<tc>, window_params = [{transform_indices = @transform_0, window_bounds = array<i64: 16, 128>}, {transform_indices = @transform_1, window_bounds = array<i64: 16, 128>}, {transform_indices = @transform_2, window_bounds = array<i64: 1, 8, 128>}]} {
    %c0_i32 = arith.constant 0 : i32
    %0 = tpu.assume_multiple %c0_i32, 16 : i32
    %1 = arith.index_cast %0 : i32 to index
    %c0 = arith.constant 0 : index
    %2 = vector.load %arg1[%1, %c0] : memref<16x128xf32, #tpu.memory_space<vmem>>, vector<16x128xf32>
    %3 = arith.index_cast %0 : i32 to index
    %c0_0 = arith.constant 0 : index
    %4 = vector.load %arg2[%3, %c0_0] : memref<16x128xf32, #tpu.memory_space<vmem>>, vector<16x128xf32>
    %cst = arith.constant 0.000000e+00 : f32
    %5 = vector.broadcast %cst : f32 to vector<16x128xf32>
    %6 = arith.maximumf %2, %5 : vector<16x128xf32>
    %7 = arith.mulf %2, %4 : vector<16x128xf32>
    %8 = arith.subf %6, %7 : vector<16x128xf32>
    %9 = math.absf %2 : vector<16x128xf32>
    %cst_1 = arith.constant 0.000000e+00 : f32
    %10 = vector.broadcast %cst_1 : f32 to vector<16x128xf32>
    %11 = arith.subf %10, %9 : vector<16x128xf32>
    %12 = math.exp %11 : vector<16x128xf32>
    %13 = math.log1p %12 : vector<16x128xf32>
    %14 = arith.addf %8, %13 : vector<16x128xf32>
    %15 = vector.shape_cast %14 : vector<16x128xf32> to vector<2x8x128xf32>
    %cst_2 = arith.constant dense<0.000000e+00> : vector<8x128xf32>
    %16 = vector.multi_reduction <add>, %15, %cst_2 [0] : vector<2x8x128xf32> to vector<8x128xf32>
    %c0_3 = arith.constant 0 : index
    %c0_4 = arith.constant 0 : index
    %c0_5 = arith.constant 0 : index
    %17 = vector.load %arg3[%c0_3, %c0_4, %c0_5] : memref<1x8x128xf32, #tpu.memory_space<vmem>>, vector<1x8x128xf32>
    %18 = vector.shape_cast %17 : vector<1x8x128xf32> to vector<8x128xf32>
    %19 = vector.shape_cast %16 : vector<8x128xf32> to vector<1x8x128xf32>
    tpu.vector_store %arg3[%c0_3, %c0_4, %c0_5], %19 {strides = array<i32>} : memref<1x8x128xf32, #tpu.memory_space<vmem>>, vector<1x8x128xf32>,
    return
  }
  func.func @transform_0(%arg0: i32) -> (i32, i32) {
    %c0_i32 = arith.constant 0 : i32
    %c0_i32_0 = arith.constant 0 : i32
    return %arg0, %c0_i32 : i32, i32
  }
  func.func @transform_1(%arg0: i32) -> (i32, i32) {
    %c0_i32 = arith.constant 0 : i32
    %c0_i32_0 = arith.constant 0 : i32
    return %arg0, %c0_i32 : i32, i32
  }
  func.func @transform_2(%arg0: i32) -> (i32, i32, i32) {
    %c0_i32 = arith.constant 0 : i32
    %c0_i32_0 = arith.constant 0 : i32
    %c0_i32_1 = arith.constant 0 : i32
    return %arg0, %c0_i32, %c0_i32_0 : i32, i32, i32
  }
}

</mosaic_0001>

<llo_original>
// kernel: tpu_custom_call.1
$region0: #{tpu_custom_call.1}
  #allocation0 [shape = 'u32[]', space=smem, size = 0x4, offset = 0x4, fixed_abs, tag = 'smem constant byte address 0x4 - core index']
  #allocation1 [shape = 'u32[144,128]{1,0:T(1,128)}', space=vmem, size = 0x12000, scoped, tag = 'internal scratch']
  %s0 = inlined_call_operand.hbm [shape: f32[16,128], index: 0, kind: input, shape index: {}]
  %s1 = inlined_call_operand.hbm [shape: f32[16,128], index: 1, kind: input, shape index: {}]
  %s2 = inlined_call_operand.hbm [shape: f32[1,8,128], index: 2, kind: output, shape index: {}]
  %s3 = sld [smem:[#allocation0]]
  $region26: #{tpu_custom_call.1} parent=0
    _
  %s5 = ssub.s32 1, %s3
  %s6 = scalar_select 0, %s5, %s3
  $region1: #{tpu_custom_call.1} parent=0
    #allocation2 [shape = 'u8[8192]{0}', space=vmem, size = 0x2000, scoped, tag = 'input window, operand 0, single buffered']
    #allocation3 [shape = 's32[1]{0}', space=sflag, size = 0x4, scoped, tag = 'scoped memory for tpu_custom_call.1']
    #allocation4 [shape = 's32[1]{0}', space=sflag, size = 0x4, scoped, tag = 'scoped memory for tpu_custom_call.1']
    #allocation5 [shape = 'u8[8192]{0}', space=vmem, size = 0x2000, scoped, tag = 'input window, operand 1, single buffered']
    #allocation6 [shape = 's32[1]{0}', space=sflag, size = 0x4, scoped, tag = 'scoped memory for tpu_custom_call.1']
    #allocation7 [shape = 'u8[4096]{0}', space=vmem, size = 0x1000, scoped, tag = 'output window, operand 0, single buffered']
    %7 = vsyncpa [#allocation3], 0
    %8 = vsyncpa [#allocation6], 0
    %9 = vsyncpa [#allocation4], 0
    // Predicated region
    $region2: #{tpu_custom_call.1} parent=1 // pred_check
      _
    $region3: #{tpu_custom_call.1} parent=1 // pred_check_branch
      %11 = sbr.rel (0) target = $region5
    $region4: #{tpu_custom_call.1} parent=1 // pred_region
      %s13 = ssub.s32 256, 256
      %14 = vsyncadd [#allocation3], %s13
      %s15 = sshll.u32 [#allocation2], 4
      %s16 = int_to_ptr.vmem [resolvable:$true] %s15
      %21 = dma.hbm_to_vmem [thread:$0]  %s0, 256, %s16, [#allocation3], 128, 128, 8
    $region5: #{tpu_custom_call.1} parent=1 // pred_fallthru
      _
    // Predicated region
    $region6: #{tpu_custom_call.1} parent=1 // pred_check
      _
    $region7: #{tpu_custom_call.1} parent=1 // pred_check_branch
      %23 = sbr.rel (0) target = $region9
    $region8: #{tpu_custom_call.1} parent=1 // pred_region
      %s25 = ssub.s32 256, 256
      %26 = vsyncadd [#allocation6], %s25
      %s27 = sshll.u32 [#allocation5], 4
      %s28 = int_to_ptr.vmem [resolvable:$true] %s27
      %33 = dma.hbm_to_vmem [thread:$0]  %s1, 256, %s28, [#allocation6], 128, 128, 8
    $region9: #{tpu_custom_call.1} parent=1 // pred_fallthru
      _
    // Predicated region
    $region10: #{tpu_custom_call.1} parent=1 // pred_check
      _
    $region11: #{tpu_custom_call.1} parent=1 // pred_check_branch
      %35 = sbr.rel (0) target = $region13
    $region12: #{tpu_custom_call.1} parent=1 // pred_region
      %36 = dma.done [#allocation3], 256
    $region13: #{tpu_custom_call.1} parent=1 // pred_fallthru
      _
    // Predicated region
    $region14: #{tpu_custom_call.1} parent=1 // pred_check
      _
    $region15: #{tpu_custom_call.1} parent=1 // pred_check_branch
      %38 = sbr.rel (0) target = $region17
    $region16: #{tpu_custom_call.1} parent=1 // pred_region
      %39 = dma.done [#allocation6], 256
    $region17: #{tpu_custom_call.1} parent=1 // pred_fallthru
      _
    %v40 = vld [vmem:[#allocation2] sm:$0xff]
    %v41 = vld [vmem:[#allocation2 + $0x8] sm:$0xff]
    %v42 = vld [vmem:[#allocation5] sm:$0xff]
    %v43 = vld [vmem:[#allocation5 + $0x8] sm:$0xff]
    %v44 = vmax.f32 %v40, 0.0
    %v45 = vmax.f32 %v41, 0.0
    %v46 = vmul.f32 %v40, %v42
    %v47 = vmul.f32 %v41, %v43
    %v48 = vsub.f32 %v44, %v46
    %v49 = vsub.f32 %v45, %v47
    %v50 = vand.u32 2147483647, %v40
    %v51 = vand.u32 2147483647, %v41
    %v52 = vsub.f32 0.0, %v50
    %v53 = vsub.f32 0.0, %v51
    %v54 = vmul.f32 %v52, 1.442695
    %v55 = vpow.pop %v54
    %v56 = vmul.f32 %v53, 1.442695
    %v57 = vpow.pop %v56
    %v58 = vadd.f32 %v55, 1.0
    %v59 = vlog2.pop %v58
    %v60 = vmul.f32 %v59, 0.6931472
    %v61 = vmul.f32 -0.5, %v55
    %v62 = vadd.f32 %v61, 1.0
    %v63 = vmul.f32 %v62, %v55
    %v64 = vand.u32 2147483647, %v55
    %vm65 = vcmp.lt.f32.partialorder %v64, 0.0004427343
    %v66 = vsel %vm65, %v63, %v60
    %v67 = vadd.f32 %v57, 1.0
    %v68 = vlog2.pop %v67
    %v69 = vmul.f32 %v68, 0.6931472
    %v70 = vmul.f32 -0.5, %v57
    %v71 = vadd.f32 %v70, 1.0
    %v72 = vmul.f32 %v71, %v57
    %v73 = vand.u32 2147483647, %v57
    %vm74 = vcmp.lt.f32.partialorder %v73, 0.0004427343
    %v75 = vsel %vm74, %v72, %v69
    %v76 = vadd.f32 %v48, %v66
    %v77 = vadd.f32 %v49, %v75
    %v78 = vadd.f32 %v76, %v77
    %79 = vst [vmem:[#allocation7] sm:$0xff] %v78
    // Predicated region
    $region18: #{tpu_custom_call.1} parent=1 // pred_check
      _
    $region19: #{tpu_custom_call.1} parent=1 // pred_check_branch
      %81 = sbr.rel (0) target = $region21
    $region20: #{tpu_custom_call.1} parent=1 // pred_region
      %s83 = ssub.s32 128, 128
      %84 = vsyncadd [#allocation4], %s83
      %s86 = sshll.u32 [#allocation7], 4
      %s87 = int_to_ptr.vmem [resolvable:$true] %s86
      %89 = dma.vmem_to_hbm [thread:$0]  %s87, 128, %s2, [#allocation4]
    $region21: #{tpu_custom_call.1} parent=1 // pred_fallthru
      _
    // Predicated region
    $region22: #{tpu_custom_call.1} parent=1 // pred_check
      _
    $region23: #{tpu_custom_call.1} parent=1 // pred_check_branch
      %91 = sbr.rel (0) target = $region25
    $region24: #{tpu_custom_call.1} parent=1 // pred_region
      %92 = dma.done [#allocation4], 128
    $region25: #{tpu_custom_call.1} parent=1 // pred_fallthru
      _
    %93 = vsyncpa [#allocation3], 1
    %94 = vsyncpa [#allocation6], 1
    %95 = vsyncpa [#allocation4], 1

</llo_original>
